<compile_context>
chip_gen: v6e
topology: v6e:2x2x1
jax: 0.10.0
libtpu: 0.0.40
codegen_flags: <defaults>
</compile_context>

<pallas_src>
import functools
import math

import jax
import jax.numpy as jnp
from jax.experimental import pallas as pl
from jax.experimental.pallas import tpu as pltpu


@functools.lru_cache(maxsize=1)
def _hw_config():
    """Per-generation (target_block_bytes, vmem_limit_bytes, tensorcores/chip)."""
    kind = ""
    try:
        kind = jax.devices()[0].device_kind.lower()
    except Exception:  # pragma: no cover - defensive; fall through to default
        pass
    if "v7" in kind:                       # v7x: 64 MiB physical VMEM, 2 TCs
        return 6 * 1024 * 1024, 40 * 1024 * 1024, 2
    if "v6" in kind:                       # v6e: 128 MiB physical VMEM
        return 8 * 1024 * 1024, 64 * 1024 * 1024, 1
    if "v5e" in kind or "v5 lite" in kind or "v5lite" in kind:
        return 4 * 1024 * 1024, 24 * 1024 * 1024, 1
    # v4 / v5p / unknown: conservative defaults
    return 4 * 1024 * 1024, 32 * 1024 * 1024, 1


def _sublane_unit(itemsize):
    """Minimum efficient sublane tile for the dtype packing."""
    return {4: 8, 2: 16, 1: 32}.get(int(itemsize), 8)


def _pick_tile(dim, unit, target):
    """Tile <= target: the full dim if it fits, else a unit-multiple divisor of
    dim if one exists, else a unit-aligned tile (Pallas masks the tail block)."""
    dim = int(dim)
    unit = int(unit)
    target = int(max(1, target))
    if dim <= target:
        return dim                          # full dim is always a legal block dim
    cap = max(unit, (target // unit) * unit)
    if dim % unit == 0:
        for cand in range(cap, unit - 1, -unit):
            if dim % cand == 0:
                return cand
    return cap                              # aligned tile + masked tail block


def _flrelu_bias_kernel(x_ref, b_ref, o_ref, *, pos_scale, neg_scale):
    # x_ref: (TILE_R, TILE_L); b_ref: (TILE_R, 1) or (1, TILE_L); broadcast add.
    v = x_ref[...] + b_ref[...]
    pos = jnp.asarray(pos_scale, dtype=v.dtype)
    neg = jnp.asarray(neg_scale, dtype=v.dtype)
    o_ref[...] = (v * jnp.where(v >= 0, pos, neg)).astype(o_ref.dtype)


def _flrelu_kernel(x_ref, o_ref, *, pos_scale, neg_scale):
    v = x_ref[...]
    pos = jnp.asarray(pos_scale, dtype=v.dtype)
    neg = jnp.asarray(neg_scale, dtype=v.dtype)
    o_ref[...] = (v * jnp.where(v >= 0, pos, neg)).astype(o_ref.dtype)


def fused_leaky_relu(x, bias=None, negative_slope=0.2, scale=2.0 ** 0.5):
    """Forward of FusedLeakyReLU.  x: (N, C, ...) (bias broadcast on dim 1)."""
    orig_shape = x.shape
    pos_scale = float(scale)
    neg_scale = float(negative_slope * scale)
    itemsize = jnp.dtype(x.dtype).itemsize
    sub_unit = _sublane_unit(itemsize)
    target_block_bytes, vmem_limit, num_tc = _hw_config()

    # ---- choose a lane-dense 2-D layout (plain reshapes only, no transposes) ----
    spatial = 1
    if x.ndim >= 3:
        n, c = int(orig_shape[0]), int(orig_shape[1])
        spatial = int(math.prod(orig_shape[2:]))
        if spatial >= 128:
            # layout A: rows = N*C (bias varies along rows), lanes = H*W (dense)
            R, L = n * c, spatial
            bias_layout = "col"
        else:
            # layout B (small spatial dims): rows = N, lanes = C*H*W (lane-dense)
            R, L = n, c * spatial
            bias_layout = "row"
    elif x.ndim == 2:
        R, L = int(orig_shape[0]), int(orig_shape[1])
        bias_layout = "row"
    else:
        R, L = 1, int(math.prod(orig_shape)) if orig_shape else 1
        bias_layout = "row"
    x2d = x.reshape(R, L)

    # ---- tile selection: prefer full, contiguous rows; respect VMEM budget ----
    lane_budget = max(128, target_block_bytes // max(1, sub_unit * itemsize))
    tile_l = _pick_tile(L, 128, lane_budget)
    row_budget = max(sub_unit, target_block_bytes // max(1, tile_l * itemsize))
    tile_r = _pick_tile(R, sub_unit, row_budget)

    # v7x: make sure the grid has >= 2 blocks so both TensorCores get work.
    if (num_tc >= 2
            and pl.cdiv(R, tile_r) * pl.cdiv(L, tile_l) < 2
            and R >= 2 * sub_unit):
        half = (R + 1) // 2
        tile_r = min(R, ((half + sub_unit - 1) // sub_unit) * sub_unit)

    grid = (pl.cdiv(R, tile_r), pl.cdiv(L, tile_l))

    x_spec = pl.BlockSpec((tile_r, tile_l), lambda i, j: (i, j))
    out_spec = pl.BlockSpec((tile_r, tile_l), lambda i, j: (i, j))
    cparams = pltpu.CompilerParams(
        dimension_semantics=("parallel", "parallel"),
        vmem_limit_bytes=int(vmem_limit))

    bias_bytes = 0 if bias is None else int(math.prod(bias.shape)) * itemsize
    cost = pl.CostEstimate(
        flops=int(3 * R * L),
        transcendentals=0,
        bytes_accessed=int(2 * R * L * itemsize + bias_bytes))

    if bias is None:
        out2d = pl.pallas_call(
            functools.partial(_flrelu_kernel,
                              pos_scale=pos_scale, neg_scale=neg_scale),
            out_shape=jax.ShapeDtypeStruct((R, L), x.dtype),
            grid=grid,
            in_specs=[x_spec],
            out_specs=out_spec,
            compiler_params=cparams,
            cost_estimate=cost,
        )(x2d)
        return out2d.reshape(orig_shape)

    bias = jnp.asarray(bias).astype(x.dtype)
    if bias_layout == "col":
        n_rep = R // int(bias.shape[0])
        b2d = jnp.tile(bias, n_rep).reshape(R, 1)            # (N*C, 1) column
        b_spec = pl.BlockSpec((tile_r, 1), lambda i, j: (i, 0))
    else:
        if x.ndim >= 3:
            b_row = jnp.repeat(bias, spatial)                 # (C*H*W,) row
        else:
            b_row = bias                                      # (C,) row
        b2d = b_row.reshape(1, L)
        b_spec = pl.BlockSpec((1, tile_l), lambda i, j: (0, j))

    out2d = pl.pallas_call(
        functools.partial(_flrelu_bias_kernel,
                          pos_scale=pos_scale, neg_scale=neg_scale),
        out_shape=jax.ShapeDtypeStruct((R, L), x.dtype),
        grid=grid,
        in_specs=[x_spec, b_spec],
        out_specs=out_spec,
        compiler_params=cparams,
        cost_estimate=cost,
    )(x2d, b2d)
    return out2d.reshape(orig_shape)


class FusedLeakyReLU:
    """JAX mirror of the PyTorch FusedLeakyReLU module (forward only)."""

    def __init__(self, in_channels, bias=True, negative_slope=0.2,
                 scale=2.0 ** 0.5):
        if bias:
            # nn.Parameter(torch.zeros(in_channels)) -> deterministic zeros
            self.bias = jnp.zeros((in_channels,), dtype=jnp.float32)
        else:
            self.bias = None
        self.negative_slope = negative_slope
        self.scale = scale

    def __call__(self, x):
        return fused_leaky_relu(x, self.bias, self.negative_slope, self.scale)


def _reference(x, bias, negative_slope, scale):
    if bias is not None:
        rest = (1,) * (x.ndim - 2)
        x = x + bias.reshape((1, bias.shape[0]) + rest)
    return jnp.where(x >= 0, x, x * negative_slope) * scale


if __name__ == "__main__":
    key = jax.random.PRNGKey(0)
    N, C, H, W = 2, 4, 16, 16
    kx, kb = jax.random.split(key)
    x = jax.random.normal(kx, (N, C, H, W), dtype=jnp.float32)
    b = jax.random.normal(kb, (C,), dtype=jnp.float32)

    mod = FusedLeakyReLU(in_channels=C, bias=True)
    # make the bias non-trivial (deterministic) so broadcasting is actually tested
    mod.bias = b

    out = jax.block_until_ready(mod(x))
    ref = _reference(x, b, mod.negative_slope, mod.scale)
    assert out.shape == x.shape
    assert jnp.allclose(out, ref, atol=1e-5, rtol=1e-5)

    # bias-less path
    out_nb = jax.block_until_ready(fused_leaky_relu(x, None, 0.2, 2.0 ** 0.5))
    ref_nb = _reference(x, None, 0.2, 2.0 ** 0.5)
    assert jnp.allclose(out_nb, ref_nb, atol=1e-5, rtol=1e-5)

    # small-spatial path (H*W < 128 -> lane axis switched to C*H*W)
    x_small = jax.random.normal(kx, (2, 4, 7, 7), dtype=jnp.float32)
    out_s = jax.block_until_ready(fused_leaky_relu(x_small, b, 0.2, 2.0 ** 0.5))
    ref_s = _reference(x_small, b, 0.2, 2.0 ** 0.5)
    assert jnp.allclose(out_s, ref_s, atol=1e-5, rtol=1e-5)

    # bf16 path (dtype-aware sublane unit)
    out_bf = jax.block_until_ready(
        fused_leaky_relu(x.astype(jnp.bfloat16), b.astype(jnp.bfloat16),
                         0.2, 2.0 ** 0.5))
    assert jnp.allclose(out_bf.astype(jnp.float32), ref, atol=0.1, rtol=0.05)

    print("KERNEL_OK")
</pallas_src>

<mosaic_0001>
module attributes {stable_mosaic.version = 11 : i64} {
  func.func @_flrelu_bias_kernel(%arg0: i32, %arg1: i32, %arg2: memref<8x256xf32, #tpu.memory_space<vmem>>, %arg3: memref<8x1xf32, #tpu.memory_space<vmem>>, %arg4: memref<8x256xf32, #tpu.memory_space<vmem>>) attributes {dimension_semantics = [#tpu.dimension_semantics<parallel>, #tpu.dimension_semantics<parallel>], iteration_bounds = array<i64: 1, 1>, scalar_prefetch = 0 : i64, scratch_operands = 0 : i64, tpu.core_type = #tpu.core_type<tc>, window_params = [{transform_indices = @transform_0, window_bounds = array<i64: 8, 256>}, {transform_indices = @transform_1, window_bounds = array<i64: 8, 1>}, {transform_indices = @transform_2, window_bounds = array<i64: 8, 256>}]} {
    %c0 = arith.constant 0 : index
    %c0_0 = arith.constant 0 : index
    %0 = vector.load %arg2[%c0, %c0_0] : memref<8x256xf32, #tpu.memory_space<vmem>>, vector<8x256xf32>
    %c0_1 = arith.constant 0 : index
    %c0_2 = arith.constant 0 : index
    %1 = vector.load %arg3[%c0_1, %c0_2] : memref<8x1xf32, #tpu.memory_space<vmem>>, vector<8x1xf32>
    %2 = vector.broadcast %1 : vector<8x1xf32> to vector<8x256xf32>
    %3 = arith.addf %0, %2 : vector<8x256xf32>
    %cst = arith.constant 0.000000e+00 : f32
    %4 = vector.broadcast %cst : f32 to vector<8x256xf32>
    %5 = arith.cmpf oge, %3, %4 : vector<8x256xf32>
    %cst_3 = arith.constant 1.41421354 : f32
    %cst_4 = arith.constant 0.282842726 : f32
    %6 = vector.broadcast %cst_3 : f32 to vector<8x256xf32>
    %7 = vector.broadcast %cst_4 : f32 to vector<8x256xf32>
    %8 = arith.select %5, %6, %7 : vector<8x256xi1>, vector<8x256xf32>
    %9 = arith.mulf %3, %8 : vector<8x256xf32>
    %c0_5 = arith.constant 0 : index
    %c0_6 = arith.constant 0 : index
    %10 = vector.load %arg4[%c0_5, %c0_6] : memref<8x256xf32, #tpu.memory_space<vmem>>, vector<8x256xf32>
    tpu.vector_store %arg4[%c0_5, %c0_6], %9 {strides = array<i32>} : memref<8x256xf32, #tpu.memory_space<vmem>>, vector<8x256xf32>,
    return
  }
  func.func @transform_0(%arg0: i32, %arg1: i32) -> (i32, i32) {
    %c0_i32 = arith.constant 0 : i32
    return %arg0, %arg1 : i32, i32
  }
  func.func @transform_1(%arg0: i32, %arg1: i32) -> (i32, i32) {
    %c0_i32 = arith.constant 0 : i32
    %c0_i32_0 = arith.constant 0 : i32
    return %arg0, %c0_i32 : i32, i32
  }
  func.func @transform_2(%arg0: i32, %arg1: i32) -> (i32, i32) {
    %c0_i32 = arith.constant 0 : i32
    return %arg0, %arg1 : i32, i32
  }
}

</mosaic_0001>

<llo_original>
// kernel: tpu_custom_call.1
$region0: #{tpu_custom_call.1}
  #allocation0 [shape = 'u32[]', space=smem, size = 0x4, offset = 0x4, fixed_abs, tag = 'smem constant byte address 0x4 - core index']
  #allocation1 [shape = 'u32[144,128]{1,0:T(1,128)}', space=vmem, size = 0x12000, scoped, tag = 'internal scratch']
  %s0 = inlined_call_operand.hbm [shape: f32[8,256], index: 0, kind: input, shape index: {}]
  %s1 = inlined_call_operand.vmem [shape: f32[8,1], index: 1, kind: input, shape index: {}]
  %s2 = inlined_call_operand.hbm [shape: f32[8,256], index: 2, kind: output, shape index: {}]
  %s3 = sld [smem:[#allocation0]]
  $region22: #{tpu_custom_call.1} parent=0
    _
  %s5 = ssub.s32 1, %s3
  %s6 = scalar_select 0, %s5, %s3
  $region1: #{tpu_custom_call.1} parent=0
    #allocation2 [shape = 'u8[8192]{0}', space=vmem, size = 0x2000, scoped, tag = 'input window, operand 0, single buffered']
    #allocation3 [shape = 's32[1]{0}', space=sflag, size = 0x4, scoped, tag = 'scoped memory for tpu_custom_call.1']
    #allocation4 [shape = 's32[1]{0}', space=sflag, size = 0x4, scoped, tag = 'scoped memory for tpu_custom_call.1']
    #allocation5 [shape = 'u8[8192]{0}', space=vmem, size = 0x2000, scoped, tag = 'output window, operand 0, single buffered']
    %7 = vsyncpa [#allocation3], 0
    %8 = vsyncpa [#allocation4], 0
    // Predicated region
    $region2: #{tpu_custom_call.1} parent=1 // pred_check
      _
    $region3: #{tpu_custom_call.1} parent=1 // pred_check_branch
      %10 = sbr.rel (0) target = $region5
    $region4: #{tpu_custom_call.1} parent=1 // pred_region
      %s12 = ssub.s32 256, 256
      %13 = vsyncadd [#allocation3], %s12
      %s15 = sshll.u32 [#allocation2], 4
      %s16 = int_to_ptr.vmem [resolvable:$true] %s15
      %18 = dma.hbm_to_vmem [thread:$0]  %s0, 256, %s16, [#allocation3]
    $region5: #{tpu_custom_call.1} parent=1 // pred_fallthru
      _
    // Predicated region
    $region6: #{tpu_custom_call.1} parent=1 // pred_check
      _
    $region7: #{tpu_custom_call.1} parent=1 // pred_check_branch
      %20 = sbr.rel (0) target = $region9
    $region8: #{tpu_custom_call.1} parent=1 // pred_region
      _
    $region9: #{tpu_custom_call.1} parent=1 // pred_fallthru
      _
    // Predicated region
    $region10: #{tpu_custom_call.1} parent=1 // pred_check
      _
    $region11: #{tpu_custom_call.1} parent=1 // pred_check_branch
      %22 = sbr.rel (0) target = $region13
    $region12: #{tpu_custom_call.1} parent=1 // pred_region
      %23 = dma.done [#allocation3], 256
    $region13: #{tpu_custom_call.1} parent=1 // pred_fallthru
      _
    %v24 = vld [vmem:[#allocation2] sm:$0xff]
    %v25 = vld [vmem:[#allocation2 + $0x8] sm:$0xff]
    %v26 = vld [vmem:[%s1] sm:$0xff]
    %28 = vset.pattern.permute.xlu0 0
    %29 = vperm.xlu0 %28, %v26
    %v30 = vpop.permute.xlu0 %29
    %v32 = vadd.f32 %v24, %v30
    %v33 = vadd.f32 %v25, %v30
    %vm34 = vcmp.ge.f32.partialorder %v32, 0.0
    %vm35 = vcmp.ge.f32.partialorder %v33, 0.0
    %v36 = vsel %vm34, 1.4142135, 0.28284273
    %v37 = vsel %vm35, 1.4142135, 0.28284273
    %v38 = vmul.f32 %v32, %v36
    %v39 = vmul.f32 %v33, %v37
    %40 = vst [vmem:[#allocation5] sm:$0xff] %v38
    %41 = vst [vmem:[#allocation5 + $0x8] sm:$0xff] %v39
    // Predicated region
    $region14: #{tpu_custom_call.1} parent=1 // pred_check
      _
    $region15: #{tpu_custom_call.1} parent=1 // pred_check_branch
      %43 = sbr.rel (0) target = $region17
    $region16: #{tpu_custom_call.1} parent=1 // pred_region
      %s45 = ssub.s32 256, 256
      %46 = vsyncadd [#allocation4], %s45
      %s48 = sshll.u32 [#allocation5], 4
      %s49 = int_to_ptr.vmem [resolvable:$true] %s48
      %51 = dma.vmem_to_hbm [thread:$0]  %s49, 256, %s2, [#allocation4]
    $region17: #{tpu_custom_call.1} parent=1 // pred_fallthru
      _
    // Predicated region
    $region18: #{tpu_custom_call.1} parent=1 // pred_check
      _
    $region19: #{tpu_custom_call.1} parent=1 // pred_check_branch
      %53 = sbr.rel (0) target = $region21
    $region20: #{tpu_custom_call.1} parent=1 // pred_region
      %54 = dma.done [#allocation4], 256
    $region21: #{tpu_custom_call.1} parent=1 // pred_fallthru
      _
    %55 = vsyncpa [#allocation3], 1
    %56 = vsyncpa [#allocation4], 1

</llo_original>
